<compile_context>
chip_gen: v6e
topology: v6e:2x2x1
jax: 0.10.0
libtpu: 0.0.40
codegen_flags: <defaults>
</compile_context>

<pallas_src>
import jax
import jax.numpy as jnp
from jax.experimental import pallas as pl
from jax.experimental.pallas import tpu as pltpu

_SLOPE = 0.2  # LeakyReLU negative slope


def _leaky(y):
    # LeakyReLU(0.2) == max(y, 0.2*y) for slope in (0, 1): no cmp+select needed.
    return jnp.maximum(y, _SLOPE * y)


# --------------------------------------------------------------------------- #
# Stage 1: conv1 -> conv2 -> running K-max, then (at k == K-1) conv3 -> N-max.
# --------------------------------------------------------------------------- #
def _feature_kernel(x_ref, w1_ref, t1_ref, w2_ref, t2_ref, w3_ref, t3_ref,
                    g_ref, acc_ref):
    k = pl.program_id(1)

    x = x_ref[0, 0]                                                   # (N, 18) bf16

    # conv1: 1x1 Conv2d(18 -> 64, bias=False) + folded BN2d + LeakyReLU
    h = jnp.dot(x, w1_ref[...], preferred_element_type=jnp.float32)
    h = _leaky(h + t1_ref[...])                                       # (N, 64) f32

    # conv2: 1x1 Conv2d(64 -> 128, bias=False) + folded BN2d + LeakyReLU
    h = jnp.dot(h.astype(jnp.bfloat16), w2_ref[...],
                preferred_element_type=jnp.float32)
    h = _leaky(h + t2_ref[...])                                       # (N, 128) f32

    # running max over the K neighbor axis (grid axis 1, "arbitrary")
    @pl.when(k == 0)
    def _():
        acc_ref[...] = h

    @pl.when(k > 0)
    def _():
        acc_ref[...] = jnp.maximum(acc_ref[...], h)

    # finalize: conv3 (Conv1d 128 -> 1024 + folded BN1d + LeakyReLU) + N-max
    @pl.when(k == pl.num_programs(1) - 1)
    def _():
        m = acc_ref[...].astype(jnp.bfloat16)                         # (N, 128)
        h3 = jnp.dot(m, w3_ref[...], preferred_element_type=jnp.float32)
        h3 = _leaky(h3 + t3_ref[...])                                 # (N, 1024)
        g_ref[0] = jnp.max(h3, axis=0, keepdims=True)                 # (1, 1024)


# --------------------------------------------------------------------------- #
# Stage 2: batched tail  linear1 -> linear2 -> transform (output padded to 128).
# --------------------------------------------------------------------------- #
def _tail_kernel(g_ref, w4_ref, t4_ref, w5_ref, t5_ref, wt_ref, bt_ref, out_ref):
    g = g_ref[...].astype(jnp.bfloat16)                               # (B, 1024)
    h = jnp.dot(g, w4_ref[...], preferred_element_type=jnp.float32)
    h = _leaky(h + t4_ref[...])                                       # (B, 512)
    h = jnp.dot(h.astype(jnp.bfloat16), w5_ref[...],
                preferred_element_type=jnp.float32)
    h = _leaky(h + t5_ref[...])                                       # (B, 256)
    out_ref[...] = (jnp.dot(h.astype(jnp.bfloat16), wt_ref[...],
                            preferred_element_type=jnp.float32)
                    + bt_ref[...])                                    # (B, 128)


# --------------------------------------------------------------------------- #
# Wrappers
# --------------------------------------------------------------------------- #
def _feature_vmem_limit(n_points):
    """Scoped-VMEM request sized from the actual resident buffers (+2x headroom)."""
    n = n_points
    est = (
        2 * n * 128 * 2                                # x block (lane-padded bf16), 2 bufs
        + n * 128 * 4                                  # K-max accumulator scratch (f32)
        + n * (64 + 128 + 1024) * 4                    # conv1/conv2/conv3 transients (f32)
        + 2 * 2 * (24 * 64 + 64 * 128 + 128 * 1024)    # bf16 weights, 2 bufs
        + 2 * 4 * (128 + 128 + 1024)                   # folded BN shifts (f32), 2 bufs
        + 2 * 1024 * 4                                 # pooled-feature output block
    )
    est = 2 * est + (2 << 20)
    # stay comfortably inside v7x's 64 MiB physical VMEM; >= v5e's 16 MiB default is fine
    return max(min(est, 40 << 20), 8 << 20)


def pooled_features(x_nchw, kparams):
    """(B, 18, N, K) f32 -> (B, 1024) f32 pooled features (conv1/conv2/K-max/conv3/N-max)."""
    (w1, t1, w2, t2, w3, t3) = kparams[:6]
    B, C_in, N, K = x_nchw.shape

    # NCHW -> (B, K, N, C), cast to bf16 first so the relayout moves half the bytes.
    x_t = jnp.transpose(x_nchw.astype(jnp.bfloat16), (0, 3, 2, 1))    # (B, K, N, 18)

    def const_spec(arr):
        # constant block index across the whole grid -> fetched once, stays resident
        return pl.BlockSpec(arr.shape, lambda b, k: (0, 0))

    g = pl.pallas_call(
        _feature_kernel,
        out_shape=jax.ShapeDtypeStruct((B, 1, 1024), jnp.float32),
        grid=(B, K),
        in_specs=[
            pl.BlockSpec((1, 1, N, C_in), lambda b, k: (b, k, 0, 0)),
            const_spec(w1), const_spec(t1),
            const_spec(w2), const_spec(t2),
            const_spec(w3), const_spec(t3),
        ],
        out_specs=pl.BlockSpec((1, 1, 1024), lambda b, k: (b, 0, 0)),
        scratch_shapes=[pltpu.VMEM((N, 128), jnp.float32)],
        compiler_params=pltpu.CompilerParams(
            # batch axis may shard across v7x's two TensorCores; the K axis
            # carries the VMEM max-accumulator so it must stay "arbitrary".
            dimension_semantics=("parallel", "arbitrary"),
            vmem_limit_bytes=_feature_vmem_limit(N),
        ),
    )(x_t, w1, t1, w2, t2, w3, t3)
    return g.reshape(B, 1024)


def transform_net_forward(x_nchw, kparams):
    """x_nchw: (B, 18, N, K) float32, same layout as the PyTorch module input."""
    (w4, t4, w5, t5, wt, bt) = kparams[6:]
    B = x_nchw.shape[0]

    g = pooled_features(x_nchw, kparams)                              # (B, 1024) f32

    out_pad = pl.pallas_call(
        _tail_kernel,
        out_shape=jax.ShapeDtypeStruct((B, 128), jnp.float32),
    )(g, w4, t4, w5, t5, wt, bt)

    return out_pad[:, :81].reshape(B, 9, 9)


# --------------------------------------------------------------------------- #
# Parameter init / fold (mirrors Transform_Net.__init__ with fresh BN stats)
# --------------------------------------------------------------------------- #
def init_params(key):
    def w_init(k, c_in, c_out):
        bound = 1.0 / (c_in ** 0.5)
        return jax.random.uniform(k, (c_in, c_out), jnp.float32, -bound, bound)

    def bn_init(c):
        # (gamma, beta, running_mean, running_var) -- fresh nn.BatchNorm defaults.
        return (jnp.ones((1, c), jnp.float32), jnp.zeros((1, c), jnp.float32),
                jnp.zeros((1, c), jnp.float32), jnp.ones((1, c), jnp.float32))

    k1, k2, k3, k4, k5 = jax.random.split(key, 5)
    return {
        "conv1": (w_init(k1, 18, 64), bn_init(64)),
        "conv2": (w_init(k2, 64, 128), bn_init(128)),
        "conv3": (w_init(k3, 128, 1024), bn_init(1024)),
        "linear1": (w_init(k4, 1024, 512), bn_init(512)),
        "linear2": (w_init(k5, 512, 256), bn_init(256)),
        # transform: weight zero-initialized, bias = identity (eye on the 9x9 view)
        "transform": (jnp.zeros((256, 81), jnp.float32),
                      jnp.eye(9, dtype=jnp.float32).reshape(1, 81)),
    }


def fold_params(params, eps=1e-5):
    """Fold eval-mode BN into bf16 weight columns + f32 shifts; pad transform to 128 lanes."""
    def fold(w, bn):
        gamma, beta, mean, var = bn
        scale = gamma / jnp.sqrt(var + eps)                           # (1, C_out)
        shift = beta - mean * scale
        return (w * scale).astype(jnp.bfloat16), shift.astype(jnp.float32)

    w1, t1 = fold(*params["conv1"])
    w2, t2 = fold(*params["conv2"])
    w3, t3 = fold(*params["conv3"])
    w4, t4 = fold(*params["linear1"])
    w5, t5 = fold(*params["linear2"])
    wt, bt = params["transform"]
    wt_p = jnp.zeros((256, 128), jnp.float32).at[:, :81].set(wt).astype(jnp.bfloat16)
    bt_p = jnp.zeros((1, 128), jnp.float32).at[:, :81].set(bt)
    return (w1, t1, w2, t2, w3, t3, w4, t4, w5, t5, wt_p, bt_p)


# --------------------------------------------------------------------------- #
# Pure-JAX f32 reference (eval-mode BN), for correctness checks
# --------------------------------------------------------------------------- #
def reference_forward(x_nchw, params, eps=1e-5):
    def fold_f32(w, bn):
        gamma, beta, mean, var = bn
        scale = gamma / jnp.sqrt(var + eps)
        return w * scale, beta - mean * scale

    w1, t1 = fold_f32(*params["conv1"])
    w2, t2 = fold_f32(*params["conv2"])
    w3, t3 = fold_f32(*params["conv3"])
    w4, t4 = fold_f32(*params["linear1"])
    w5, t5 = fold_f32(*params["linear2"])
    wt, bt = params["transform"]

    leaky = lambda y: jnp.maximum(y, 0.2 * y)
    B = x_nchw.shape[0]
    x = jnp.transpose(x_nchw, (0, 2, 3, 1))                           # (B, N, K, 18)
    h = leaky(jnp.einsum("bnkc,cd->bnkd", x, w1) + t1)
    h = leaky(jnp.einsum("bnkc,cd->bnkd", h, w2) + t2)
    m = h.max(axis=2)                                                 # K-max -> (B, N, 128)
    h = leaky(jnp.einsum("bnc,cd->bnd", m, w3) + t3)
    g = h.max(axis=1)                                                 # N-max -> (B, 1024)
    h = leaky(g @ w4 + t4)
    h = leaky(h @ w5 + t5)
    out = (h @ wt + bt).reshape(B, 9, 9)
    return out, g


if __name__ == "__main__":
    key = jax.random.PRNGKey(0)
    kx, kp = jax.random.split(key)

    B, N, K = 2, 16, 8                        # batch, points, neighbors; channels fixed at 18
    x = jax.random.normal(kx, (B, 18, N, K), dtype=jnp.float32)

    params = init_params(kp)
    kparams = fold_params(params)

    out = transform_net_forward(x, kparams)
    out = jax.block_until_ready(out)
    assert out.shape == (B, 9, 9), out.shape

    # Check the conv/pooling path against a pure-JAX f32 reference (bf16 matmul tolerance).
    g_kernel = jax.block_until_ready(pooled_features(x, kparams))
    ref_out, ref_g = reference_forward(x, params)
    assert jnp.allclose(g_kernel, ref_g, atol=3e-2, rtol=3e-2), "pooled features mismatch"

    # With transform.weight == 0 and transform.bias == eye(9), the output must be identity.
    expected = jnp.broadcast_to(jnp.eye(9, dtype=jnp.float32), (B, 9, 9))
    assert jnp.allclose(ref_out, expected, atol=1e-5)
    assert jnp.allclose(out, expected, atol=1e-4), out

    print("KERNEL_OK")
</pallas_src>

<mosaic_0001>
module attributes {stable_mosaic.version = 11 : i64} {
  func.func @_feature_kernel(%arg0: i32, %arg1: i32, %arg2: memref<1x1x16x18xbf16, #tpu.memory_space<vmem>>, %arg3: memref<18x64xbf16, #tpu.memory_space<vmem>>, %arg4: memref<1x64xf32, #tpu.memory_space<vmem>>, %arg5: memref<64x128xbf16, #tpu.memory_space<vmem>>, %arg6: memref<1x128xf32, #tpu.memory_space<vmem>>, %arg7: memref<128x1024xbf16, #tpu.memory_space<vmem>>, %arg8: memref<1x1024xf32, #tpu.memory_space<vmem>>, %arg9: memref<1x1x1024xf32, #tpu.memory_space<vmem>>, %arg10: memref<16x128xf32, #tpu.memory_space<vmem>>) attributes {dimension_semantics = [#tpu.dimension_semantics<parallel>, #tpu.dimension_semantics<arbitrary>], iteration_bounds = array<i64: 2, 8>, scalar_prefetch = 0 : i64, scratch_operands = 1 : i64, tpu.core_type = #tpu.core_type<tc>, window_params = [{transform_indices = @transform_0, window_bounds = array<i64: 1, 1, 16, 18>}, {pipeline_mode = #tpu.pipeline_mode<synchronous>, transform_indices = @transform_1, window_bounds = array<i64: 18, 64>}, {pipeline_mode = #tpu.pipeline_mode<synchronous>, transform_indices = @transform_2, window_bounds = array<i64: 1, 64>}, {pipeline_mode = #tpu.pipeline_mode<synchronous>, transform_indices = @transform_3, window_bounds = array<i64: 64, 128>}, {pipeline_mode = #tpu.pipeline_mode<synchronous>, transform_indices = @transform_4, window_bounds = array<i64: 1, 128>}, {pipeline_mode = #tpu.pipeline_mode<synchronous>, transform_indices = @transform_5, window_bounds = array<i64: 128, 1024>}, {pipeline_mode = #tpu.pipeline_mode<synchronous>, transform_indices = @transform_6, window_bounds = array<i64: 1, 1024>}, {transform_indices = @transform_7, window_bounds = array<i64: 1, 1, 1024>}]} {
    %c0 = arith.constant 0 : index
    %c0_0 = arith.constant 0 : index
    %c0_1 = arith.constant 0 : index
    %c0_2 = arith.constant 0 : index
    %0 = vector.load %arg2[%c0, %c0_0, %c0_1, %c0_2] : memref<1x1x16x18xbf16, #tpu.memory_space<vmem>>, vector<1x1x16x18xbf16>
    %1 = vector.shape_cast %0 : vector<1x1x16x18xbf16> to vector<16x18xbf16>
    %c0_3 = arith.constant 0 : index
    %c0_4 = arith.constant 0 : index
    %2 = vector.load %arg3[%c0_3, %c0_4] : memref<18x64xbf16, #tpu.memory_space<vmem>>, vector<18x64xbf16>
    %cst = arith.constant dense<0.000000e+00> : vector<16x64xf32>
    %3 = tpu.matmul %1, %2, %cst {dimension_numbers = #tpu.dot_dimension_numbers<[1], [0], [0], [1], [0, 0, 1, 1], [], []>} : vector<16x18xbf16>, vector<18x64xbf16>, vector<16x64xf32> -> vector<16x64xf32>
    %c0_5 = arith.constant 0 : index
    %c0_6 = arith.constant 0 : index
    %4 = vector.load %arg4[%c0_5, %c0_6] : memref<1x64xf32, #tpu.memory_space<vmem>>, vector<1x64xf32>
    %5 = vector.broadcast %4 : vector<1x64xf32> to vector<16x64xf32>
    %6 = arith.addf %3, %5 : vector<16x64xf32>
    %cst_7 = arith.constant 2.000000e-01 : f32
    %7 = vector.broadcast %cst_7 : f32 to vector<16x64xf32>
    %8 = arith.mulf %7, %6 : vector<16x64xf32>
    %9 = arith.maximumf %6, %8 : vector<16x64xf32>
    %10 = arith.truncf %9 : vector<16x64xf32> to vector<16x64xbf16>
    %c0_8 = arith.constant 0 : index
    %c0_9 = arith.constant 0 : index
    %11 = vector.load %arg5[%c0_8, %c0_9] : memref<64x128xbf16, #tpu.memory_space<vmem>>, vector<64x128xbf16>
    %cst_10 = arith.constant dense<0.000000e+00> : vector<16x128xf32>
    %12 = tpu.matmul %10, %11, %cst_10 {dimension_numbers = #tpu.dot_dimension_numbers<[1], [0], [0], [1], [0, 0, 1, 1], [], []>} : vector<16x64xbf16>, vector<64x128xbf16>, vector<16x128xf32> -> vector<16x128xf32>
    %c0_11 = arith.constant 0 : index
    %c0_12 = arith.constant 0 : index
    %13 = vector.load %arg6[%c0_11, %c0_12] : memref<1x128xf32, #tpu.memory_space<vmem>>, vector<1x128xf32>
    %14 = vector.broadcast %13 : vector<1x128xf32> to vector<16x128xf32>
    %15 = arith.addf %12, %14 : vector<16x128xf32>
    %cst_13 = arith.constant 2.000000e-01 : f32
    %16 = vector.broadcast %cst_13 : f32 to vector<16x128xf32>
    %17 = arith.mulf %16, %15 : vector<16x128xf32>
    %18 = arith.maximumf %15, %17 : vector<16x128xf32>
    %c0_i32 = arith.constant 0 : i32
    %19 = arith.cmpi eq, %arg1, %c0_i32 : i32
    %20 = arith.extui %19 : i1 to i32
    %c0_i32_14 = arith.constant 0 : i32
    %21 = arith.cmpi ne, %20, %c0_i32_14 : i32
    scf.if %21 {
      %c0_18 = arith.constant 0 : index
      %c0_19 = arith.constant 0 : index
      %28 = vector.load %arg10[%c0_18, %c0_19] : memref<16x128xf32, #tpu.memory_space<vmem>>, vector<16x128xf32>
      tpu.vector_store %arg10[%c0_18, %c0_19], %18 {strides = array<i32>} : memref<16x128xf32, #tpu.memory_space<vmem>>, vector<16x128xf32>,
    } else {
    }
    %c0_i32_15 = arith.constant 0 : i32
    %22 = arith.cmpi sgt, %arg1, %c0_i32_15 : i32
    %23 = arith.extui %22 : i1 to i32
    %c0_i32_16 = arith.constant 0 : i32
    %24 = arith.cmpi ne, %23, %c0_i32_16 : i32
    scf.if %24 {
      %c0_18 = arith.constant 0 : index
      %c0_19 = arith.constant 0 : index
      %28 = vector.load %arg10[%c0_18, %c0_19] : memref<16x128xf32, #tpu.memory_space<vmem>>, vector<16x128xf32>
      %29 = arith.maximumf %28, %18 : vector<16x128xf32>
      %c0_20 = arith.constant 0 : index
      %c0_21 = arith.constant 0 : index
      %30 = vector.load %arg10[%c0_20, %c0_21] : memref<16x128xf32, #tpu.memory_space<vmem>>, vector<16x128xf32>
      tpu.vector_store %arg10[%c0_20, %c0_21], %29 {strides = array<i32>} : memref<16x128xf32, #tpu.memory_space<vmem>>, vector<16x128xf32>,
    } else {
    }
    %c7_i32 = arith.constant 7 : i32
    %25 = arith.cmpi eq, %arg1, %c7_i32 : i32
    %26 = arith.extui %25 : i1 to i32
    %c0_i32_17 = arith.constant 0 : i32
    %27 = arith.cmpi ne, %26, %c0_i32_17 : i32
    scf.if %27 {
      %c0_18 = arith.constant 0 : index
      %c0_19 = arith.constant 0 : index
      %28 = vector.load %arg10[%c0_18, %c0_19] : memref<16x128xf32, #tpu.memory_space<vmem>>, vector<16x128xf32>
      %29 = arith.truncf %28 : vector<16x128xf32> to vector<16x128xbf16>
      %c0_20 = arith.constant 0 : index
      %c0_21 = arith.constant 0 : index
      %30 = vector.load %arg7[%c0_20, %c0_21] : memref<128x1024xbf16, #tpu.memory_space<vmem>>, vector<128x1024xbf16>
      %cst_22 = arith.constant dense<0.000000e+00> : vector<16x1024xf32>
      %31 = tpu.matmul %29, %30, %cst_22 {dimension_numbers = #tpu.dot_dimension_numbers<[1], [0], [0], [1], [0, 0, 1, 1], [], []>} : vector<16x128xbf16>, vector<128x1024xbf16>, vector<16x1024xf32> -> vector<16x1024xf32>
      %c0_23 = arith.constant 0 : index
      %c0_24 = arith.constant 0 : index
      %32 = vector.load %arg8[%c0_23, %c0_24] : memref<1x1024xf32, #tpu.memory_space<vmem>>, vector<1x1024xf32>
      %33 = vector.broadcast %32 : vector<1x1024xf32> to vector<16x1024xf32>
      %34 = arith.addf %31, %33 : vector<16x1024xf32>
      %cst_25 = arith.constant 2.000000e-01 : f32
      %35 = vector.broadcast %cst_25 : f32 to vector<16x1024xf32>
      %36 = arith.mulf %35, %34 : vector<16x1024xf32>
      %37 = arith.maximumf %34, %36 : vector<16x1024xf32>
      %cst_26 = arith.constant dense<0xFF800000> : vector<1024xf32>
      %38 = vector.multi_reduction <maximumf>, %37, %cst_26 [0] : vector<16x1024xf32> to vector<1024xf32>
      %39 = vector.shape_cast %38 : vector<1024xf32> to vector<1x1024xf32>
      %c0_27 = arith.constant 0 : index
      %c0_28 = arith.constant 0 : index
      %c0_29 = arith.constant 0 : index
      %40 = vector.load %arg9[%c0_27, %c0_28, %c0_29] : memref<1x1x1024xf32, #tpu.memory_space<vmem>>, vector<1x1x1024xf32>
      %41 = vector.shape_cast %40 : vector<1x1x1024xf32> to vector<1x1024xf32>
      %42 = vector.shape_cast %39 : vector<1x1024xf32> to vector<1x1x1024xf32>
      tpu.vector_store %arg9[%c0_27, %c0_28, %c0_29], %42 {strides = array<i32>} : memref<1x1x1024xf32, #tpu.memory_space<vmem>>, vector<1x1x1024xf32>,
    } else {
    }
    return
  }
  func.func @transform_0(%arg0: i32, %arg1: i32) -> (i32, i32, i32, i32) {
    %c0_i32 = arith.constant 0 : i32
    %c0_i32_0 = arith.constant 0 : i32
    %c0_i32_1 = arith.constant 0 : i32
    return %arg0, %arg1, %c0_i32, %c0_i32_0 : i32, i32, i32, i32
  }
  func.func @transform_1(%arg0: i32, %arg1: i32) -> (i32, i32) {
    %c0_i32 = arith.constant 0 : i32
    %c0_i32_0 = arith.constant 0 : i32
    %c0_i32_1 = arith.constant 0 : i32
    return %c0_i32, %c0_i32_0 : i32, i32
  }
  func.func @transform_2(%arg0: i32, %arg1: i32) -> (i32, i32) {
    %c0_i32 = arith.constant 0 : i32
    %c0_i32_0 = arith.constant 0 : i32
    %c0_i32_1 = arith.constant 0 : i32
    return %c0_i32, %c0_i32_0 : i32, i32
  }
  func.func @transform_3(%arg0: i32, %arg1: i32) -> (i32, i32) {
    %c0_i32 = arith.constant 0 : i32
    %c0_i32_0 = arith.constant 0 : i32
    %c0_i32_1 = arith.constant 0 : i32
    return %c0_i32, %c0_i32_0 : i32, i32
  }
  func.func @transform_4(%arg0: i32, %arg1: i32) -> (i32, i32) {
    %c0_i32 = arith.constant 0 : i32
    %c0_i32_0 = arith.constant 0 : i32
    %c0_i32_1 = arith.constant 0 : i32
    return %c0_i32, %c0_i32_0 : i32, i32
  }
  func.func @transform_5(%arg0: i32, %arg1: i32) -> (i32, i32) {
    %c0_i32 = arith.constant 0 : i32
    %c0_i32_0 = arith.constant 0 : i32
    %c0_i32_1 = arith.constant 0 : i32
    return %c0_i32, %c0_i32_0 : i32, i32
  }
  func.func @transform_6(%arg0: i32, %arg1: i32) -> (i32, i32) {
    %c0_i32 = arith.constant 0 : i32
    %c0_i32_0 = arith.constant 0 : i32
    %c0_i32_1 = arith.constant 0 : i32
    return %c0_i32, %c0_i32_0 : i32, i32
  }
  func.func @transform_7(%arg0: i32, %arg1: i32) -> (i32, i32, i32) {
    %c0_i32 = arith.constant 0 : i32
    %c0_i32_0 = arith.constant 0 : i32
    %c0_i32_1 = arith.constant 0 : i32
    return %arg0, %c0_i32, %c0_i32_0 : i32, i32, i32
  }
}

</mosaic_0001>

<llo_original>
// kernel: tpu_custom_call.1
$region0: #{tpu_custom_call.1}
  #allocation0 [shape = 'u32[]', space=smem, size = 0x4, offset = 0x4, fixed_abs, tag = 'smem constant byte address 0x4 - core index']
  #allocation1 [shape = 'u32[144,128]{1,0:T(1,128)}', space=vmem, size = 0x12000, scoped, tag = 'internal scratch']
  #allocation2 [shape = 'f32[16,128]{1,0:T(8,128)}', space=vmem, size = 0x2000, scoped, tag = 'scratch operand']
  %s0 = inlined_call_operand.hbm [shape: bf16[2,8,16,18], index: 0, kind: input, shape index: {}]
  %s1 = inlined_call_operand.hbm [shape: bf16[18,64], index: 1, kind: input, shape index: {}]
  %s2 = inlined_call_operand.vmem [shape: f32[1,64], index: 2, kind: input, shape index: {}]
  %s3 = inlined_call_operand.hbm [shape: bf16[64,128], index: 3, kind: input, shape index: {}]
  %s4 = inlined_call_operand.vmem [shape: f32[1,128], index: 4, kind: input, shape index: {}]
  %s5 = inlined_call_operand.hbm [shape: bf16[128,1024], index: 5, kind: input, shape index: {}]
  %s6 = inlined_call_operand.vmem [shape: f32[1,1024], index: 6, kind: input, shape index: {}]
  %s7 = inlined_call_operand.hbm [shape: f32[2,1,1024], index: 7, kind: output, shape index: {}]
  %s8 = sld [smem:[#allocation0]]
  $region89: #{tpu_custom_call.1} parent=0
    _
  %s10 = ssub.s32 1, %s8
  %s11 = scalar_select 0, %s10, %s8
  $region1: #{tpu_custom_call.1} parent=0
    #allocation3 [shape = 'u8[8192]{0}', space=vmem, size = 0x2000, scoped, tag = 'input window, operand 0']
    #allocation4 [shape = 's32[2]{0}', space=sflag, size = 0x8, scoped, tag = 'scoped memory for tpu_custom_call.1']
    #allocation5 [shape = 's32[2]{0}', space=sflag, size = 0x8, scoped, tag = 'scoped memory for tpu_custom_call.1']
    #allocation6 [shape = 'u8[6144]{0}', space=vmem, size = 0x1800, scoped, tag = 'input window, operand 1, single buffered']
    #allocation7 [shape = 's32[1]{0}', space=sflag, size = 0x4, scoped, tag = 'scoped memory for tpu_custom_call.1']
    #allocation8 [shape = 'u8[16384]{0}', space=vmem, size = 0x4000, scoped, tag = 'input window, operand 3, single buffered']
    #allocation9 [shape = 'u8[262144]{0}', space=vmem, size = 0x40000, scoped, tag = 'input window, operand 5, single buffered']
    #allocation10 [shape = 's32[1]{0}', space=sflag, size = 0x4, scoped, tag = 'scoped memory for tpu_custom_call.1']
    #allocation11 [shape = 'u8[8192]{0}', space=vmem, size = 0x2000, scoped, tag = 'output window, operand 0']
    %12 = vsyncpa [#allocation4], 0
    %s13 = scalar_lea.sflag [#allocation4], 1
    %14 = vsyncpa %s13, 0
    %15 = vsyncpa [#allocation7], 0
    %16 = vsyncpa [#allocation10], 0
    %17 = vsyncpa [#allocation5], 0
    %s18 = scalar_lea.sflag [#allocation5], 1
    %19 = vsyncpa %s18, 0
    loop: start=0, step=1, limit=18
    $region2: #{tpu_custom_call.1} parent=1 // loop_pre_header
      _
    $region3: #{tpu_custom_call.1} parent=1 // loop_header
      %s21 = sphi 0, %s25
      %p22 = scmp.ge.s32.totalorder %s21, 18
      %s28 = sphi 0, %s40
      %s29 = sphi 0, %s36
      %s30 = sphi 0, %s28
      %s31 = sphi 0, %s29
      %s32 = sphi 0, %s30
      %s33 = sphi 0, %s31
      %s45 = sphi 0, %s47
      %s48 = sphi 0, %s45
      %s49 = sphi 0, %s48
      %s65 = sphi 0, %s49
      %s69 = sphi 0, %s69
      %s71 = sphi 0, %s69
      %s72 = sphi 0, %s71
      %s86 = sphi 0, %s72
      %s90 = sphi 0, %s90
      %s92 = sphi 0, %s90
      %s93 = sphi 0, %s92
      %s107 = sphi 0, %s93
      %s111 = sphi 0, %s111
      %s113 = sphi 0, %s111
      %s114 = sphi 0, %s113
      %s128 = sphi 0, %s114
      %s132 = sphi 0, %s132
      %s134 = sphi 0, %s132
      %s135 = sphi 0, %s134
      %s149 = sphi 0, %s135
      %s153 = sphi 0, %s153
      %s155 = sphi 0, %s153
      %s156 = sphi 0, %s155
      %s170 = sphi 0, %s156
      %s174 = sphi 0, %s174
      %s176 = sphi 0, %s174
      %s177 = sphi 0, %s176
      %s191 = sphi 0, %s177
      %s197 = sphi 0, %s199
      %s200 = sphi 0, %s197
      %s201 = sphi 0, %s200
      %s217 = sphi 0, %s201
    $region4: #{tpu_custom_call.1} parent=1 // loop_header_branch
      %24 = sbr.rel (%p22) target = $region8
    $region5: #{tpu_custom_call.1} parent=1 // loop_body
      %s26 = ssub.s32 %s21, 1
      %s27 = ssub.s32 %s21, 2
      %s34 = sadd.s32 1, %s29
      %p35 = scmp.ge.s32.totalorder %s34, 8
      %s36 = scalar_select %p35, 0, %s34
      %s37 = sadd.s32 1, %s28
      %s38 = scalar_select %p35, %s37, %s28
      %p39 = scmp.ge.s32.totalorder %s38, 2
      %s40 = scalar_select %p39, 0, %s38
      %s41 = ssub.s32 %s28, %s40
      %s42 = ssub.s32 %s29, %s36
      %s43 = sor.u32 %s41, %s42
      %p44 = scmp.eq.s32.totalorder %s43, 0
      %s46 = sadd.s32 %s45, 1
      %s47 = scalar_select %p44, %s45, %s46
      %p50 = pneg %p44
      %p51 = scmp.eq.s32.totalorder %s21, 15
      %p52 = por %p50, %p51
      %p53 = scmp.ne.s32.totalorder %s45, %s48
      %p54 = scmp.eq.s32.totalorder %s21, 0
      %p55 = por %p53, %p54
      %p56 = scmp.ne.s32.totalorder %s45, %s48
      %p57 = scmp.eq.s32.totalorder %s26, 15
      %p58 = por %p56, %p57
      %p59 = scmp.ne.s32.totalorder %s48, %s49
      %p60 = scmp.eq.s32.totalorder %s26, 0
      %p61 = por %p59, %p60
      %p62 = scmp.ne.s32.totalorder %s48, %s49
      %p63 = scmp.eq.s32.totalorder %s27, 15
      %p64 = por %p62, %p63
      %p66 = scmp.ne.s32.totalorder %s49, %s65
      %p67 = scmp.eq.s32.totalorder %s27, 0
      %p68 = por %p66, %p67
      %s70 = sadd.s32 %s69, 1
      %p73 = scmp.eq.s32.totalorder %s21, 15
      %p74 = scmp.ne.s32.totalorder %s69, %s71
      %p75 = scmp.eq.s32.totalorder %s21, 0
      %p76 = por %p74, %p75
      %p77 = scmp.ne.s32.totalorder %s69, %s71
      %p78 = scmp.eq.s32.totalorder %s26, 15
      %p79 = por %p77, %p78
      %p80 = scmp.ne.s32.totalorder %s71, %s72
      %p81 = scmp.eq.s32.totalorder %s26, 0
      %p82 = por %p80, %p81
      %p83 = scmp.ne.s32.totalorder %s71, %s72
      %p84 = scmp.eq.s32.totalorder %s27, 15
      %p85 = por %p83, %p84
      %p87 = scmp.ne.s32.totalorder %s72, %s86
      %p88 = scmp.eq.s32.totalorder %s27, 0
      %p89 = por %p87, %p88
      %s91 = sadd.s32 %s90, 1
      %p94 = scmp.eq.s32.totalorder %s21, 15
      %p95 = scmp.ne.s32.totalorder %s90, %s92
      %p96 = scmp.eq.s32.totalorder %s21, 0
      %p97 = por %p95, %p96
      %p98 = scmp.ne.s32.totalorder %s90, %s92
      %p99 = scmp.eq.s32.totalorder %s26, 15
      %p100 = por %p98, %p99
      %p101 = scmp.ne.s32.totalorder %s92, %s93
      %p102 = scmp.eq.s32.totalorder %s26, 0
      %p103 = por %p101, %p102
      %p104 = scmp.ne.s32.totalorder %s92, %s93
      %p105 = scmp.eq.s32.totalorder %s27, 15
      %p106 = por %p104, %p105
      %p108 = scmp.ne.s32.totalorder %s93, %s107
      %p109 = scmp.eq.s32.totalorder %s27, 0
      %p110 = por %p108, %p109
      %s112 = sadd.s32 %s111, 1
      %p115 = scmp.eq.s32.totalorder %s21, 15
      %p116 = scmp.ne.s32.totalorder %s111, %s113
      %p117 = scmp.eq.s32.totalorder %s21, 0
      %p118 = por %p116, %p117
      %p119 = scmp.ne.s32.totalorder %s111, %s113
      %p120 = scmp.eq.s32.totalorder %s26, 15
      %p121 = por %p119, %p120
      %p122 = scmp.ne.s32.totalorder %s113, %s114
      %p123 = scmp.eq.s32.totalorder %s26, 0
      %p124 = por %p122, %p123
      %p125 = scmp.ne.s32.totalorder %s113, %s114
      %p126 = scmp.eq.s32.totalorder %s27, 15
      %p127 = por %p125, %p126
      %p129 = scmp.ne.s32.totalorder %s114, %s128
      %p130 = scmp.eq.s32.totalorder %s27, 0
      %p131 = por %p129, %p130
      %s133 = sadd.s32 %s132, 1
      %p136 = scmp.eq.s32.totalorder %s21, 15
      %p137 = scmp.ne.s32.totalorder %s132, %s134
      %p138 = scmp.eq.s32.totalorder %s21, 0
      %p139 = por %p137, %p138
      %p140 = scmp.ne.s32.totalorder %s132, %s134
      %p141 = scmp.eq.s32.totalorder %s26, 15
      %p142 = por %p140, %p141
      %p143 = scmp.ne.s32.totalorder %s134, %s135
      %p144 = scmp.eq.s32.totalorder %s26, 0
      %p145 = por %p143, %p144
      %p146 = scmp.ne.s32.totalorder %s134, %s135
      %p147 = scmp.eq.s32.totalorder %s27, 15
      %p148 = por %p146, %p147
      %p150 = scmp.ne.s32.totalorder %s135, %s149
      %p151 = scmp.eq.s32.totalorder %s27, 0
      %p152 = por %p150, %p151
      %s154 = sadd.s32 %s153, 1
      %p157 = scmp.eq.s32.totalorder %s21, 15
      %p158 = scmp.ne.s32.totalorder %s153, %s155
      %p159 = scmp.eq.s32.totalorder %s21, 0
      %p160 = por %p158, %p159
      %p161 = scmp.ne.s32.totalorder %s153, %s155
      %p162 = scmp.eq.s32.totalorder %s26, 15
      %p163 = por %p161, %p162
      %p164 = scmp.ne.s32.totalorder %s155, %s156
      %p165 = scmp.eq.s32.totalorder %s26, 0
      %p166 = por %p164, %p165
      %p167 = scmp.ne.s32.totalorder %s155, %s156
      %p168 = scmp.eq.s32.totalorder %s27, 15
      %p169 = por %p167, %p168
      %p171 = scmp.ne.s32.totalorder %s156, %s170
      %p172 = scmp.eq.s32.totalorder %s27, 0
      %p173 = por %p171, %p172
      %s175 = sadd.s32 %s174, 1
      %p178 = scmp.eq.s32.totalorder %s21, 15
      %p179 = scmp.ne.s32.totalorder %s174, %s176
      %p180 = scmp.eq.s32.totalorder %s21, 0
      %p181 = por %p179, %p180
      %p182 = scmp.ne.s32.totalorder %s174, %s176
      %p183 = scmp.eq.s32.totalorder %s26, 15
      %p184 = por %p182, %p183
      %p185 = scmp.ne.s32.totalorder %s176, %s177
      %p186 = scmp.eq.s32.totalorder %s26, 0
      %p187 = por %p185, %p186
      %p188 = scmp.ne.s32.totalorder %s176, %s177
      %p189 = scmp.eq.s32.totalorder %s27, 15
      %p190 = por %p188, %p189
      %p192 = scmp.ne.s32.totalorder %s177, %s191
      %p193 = scmp.eq.s32.totalorder %s27, 0
      %p194 = por %p192, %p193
      %s195 = ssub.s32 %s28, %s40
      %p196 = scmp.eq.s32.totalorder %s195, 0
      %s198 = sadd.s32 %s197, 1
      %s199 = scalar_select %p196, %s197, %s198
      %p202 = pneg %p196
      %p203 = scmp.eq.s32.totalorder %s21, 15
      %p204 = por %p202, %p203
      %p205 = scmp.ne.s32.totalorder %s197, %s200
      %p206 = scmp.eq.s32.totalorder %s21, 0
      %p207 = por %p205, %p206
      %p208 = scmp.ne.s32.totalorder %s197, %s200
      %p209 = scmp.eq.s32.totalorder %s26, 15
      %p210 = por %p208, %p209
      %p211 = scmp.ne.s32.totalorder %s200, %s201
      %p212 = scmp.eq.s32.totalorder %s26, 0
      %p213 = por %p211, %p212
      %p214 = scmp.ne.s32.totalorder %s200, %s201
      %p215 = scmp.eq.s32.totalorder %s27, 15
      %p216 = por %p214, %p215
      %p218 = scmp.ne.s32.totalorder %s201, %s217
      %p219 = scmp.eq.s32.totalorder %s27, 0
      %p220 = por %p218, %p219
      %p221 = scmp.le.s32.totalorder 1, %s21
      %p222 = scmp.lt.s32.totalorder %s21, 17
      %p223 = pnand %p221, %p222
      %p224 = pneg %p223
      // Predicated region
      $region9: #{tpu_custom_call.1} parent=5 // pred_check
        _
      $region10: #{tpu_custom_call.1} parent=5 // pred_check_branch
        %226 = sbr.rel (%p223) target = $region12
      $region11: #{tpu_custom_call.1} parent=5 // pred_region
        %s227 = ssub.s32 %s21, 1
        // Predicated region
        $region13: #{tpu_custom_call.1} parent=11 // pred_check
          %p228 = pneg %p82
        $region14: #{tpu_custom_call.1} parent=11 // pred_check_branch
          %230 = sbr.rel (%p228) target = $region16
        $region15: #{tpu_custom_call.1} parent=11 // pred_region
          %s232 = ssub.s32 192, 192
          %233 = vsyncadd [#allocation7], %s232
          %s234 = sshll.u32 [#allocation6], 4
          %s235 = int_to_ptr.vmem [resolvable:$true] %s234
          %240 = dma.hbm_to_vmem [thread:$0]  %s1, 192, %s235, [#allocation7], 64, 64, 4
        $region16: #{tpu_custom_call.1} parent=11 // pred_fallthru
          _
        // Predicated region
        $region17: #{tpu_custom_call.1} parent=11 // pred_check
          %p241 = pneg %p103
        $region18: #{tpu_custom_call.1} parent=11 // pred_check_branch
          %243 = sbr.rel (%p241) target = $region20
        $region19: #{tpu_custom_call.1} parent=11 // pred_region
          _
        $region20: #{tpu_custom_call.1} parent=11 // pred_fallthru
          _
        // Predicated region
        $region21: #{tpu_custom_call.1} parent=11 // pred_check
          %p244 = pneg %p124
        $region22: #{tpu_custom_call.1} parent=11 // pred_check_branch
          %246 = sbr.rel (%p244) target = $region24
        $region23: #{tpu_custom_call.1} parent=11 // pred_region
          %s248 = ssub.s32 512, 512
          %249 = vsyncadd [#allocation7], %s248
          %s250 = sshll.u32 [#allocation8], 4
          %s251 = int_to_ptr.vmem [resolvable:$true] %s250
          %256 = dma.hbm_to_vmem [thread:$0]  %s3, 512, %s251, [#allocation7], 64, 64, 4
        $region24: #{tpu_custom_call.1} parent=11 // pred_fallthru
          _
        // Predicated region
        $region25: #{tpu_custom_call.1} parent=11 // pred_check
          %p257 = pneg %p145
        $region26: #{tpu_custom_call.1} parent=11 // pred_check_branch
          %259 = sbr.rel (%p257) target = $region28
        $region27: #{tpu_custom_call.1} parent=11 // pred_region
          _
        $region28: #{tpu_custom_call.1} parent=11 // pred_fallthru
          _
        // Predicated region
        $region29: #{tpu_custom_call.1} parent=11 // pred_check
          %p260 = pneg %p166
        $region30: #{tpu_custom_call.1} parent=11 // pred_check_branch
          %262 = sbr.rel (%p260) target = $region32
        $region31: #{tpu_custom_call.1} parent=11 // pred_region
          %s264 = ssub.s32 8192, 8192
          %265 = vsyncadd [#allocation10], %s264
          %s266 = sshll.u32 [#allocation9], 4
          %s267 = int_to_ptr.vmem [resolvable:$true] %s266
          %272 = dma.hbm_to_vmem [thread:$0]  %s5, 8192, %s267, [#allocation10], 512, 512, 32
        $region32: #{tpu_custom_call.1} parent=11 // pred_fallthru
          _
        // Predicated region
        $region33: #{tpu_custom_call.1} parent=11 // pred_check
          %p273 = pneg %p187
        $region34: #{tpu_custom_call.1} parent=11 // pred_check_branch
          %275 = sbr.rel (%p273) target = $region36
        $region35: #{tpu_custom_call.1} parent=11 // pred_region
          _
        $region36: #{tpu_custom_call.1} parent=11 // pred_fallthru
          _
      $region12: #{tpu_custom_call.1} parent=5 // pred_fallthru
        _
      %p276 = scmp.lt.s32.totalorder %s21, 16
      // Predicated region
      $region37: #{tpu_custom_call.1} parent=5 // pred_check
        %p277 = pneg %p276
      $region38: #{tpu_custom_call.1} parent=5 // pred_check_branch
        %279 = sbr.rel (%p277) target = $region40
      $region39: #{tpu_custom_call.1} parent=5 // pred_region
        // Predicated region
        $region41: #{tpu_custom_call.1} parent=39 // pred_check
          %p280 = pneg %p55
        $region42: #{tpu_custom_call.1} parent=39 // pred_check_branch
          %282 = sbr.rel (%p280) target = $region44
        $region43: #{tpu_custom_call.1} parent=39 // pred_region
          %s283 = sand.u32 %s45, 1
          %s284 = scalar_lea.sflag [#allocation4], %s283
          %s285 = sand.u32 %s45, 1
          %s286 = smul.addr %s285, 8
          %s287 = scalar_lea.vmem [#allocation3], %s286
          %s289 = ssub.s32 128, 128
          %290 = vsyncadd %s284, %s289
          %s291 = smul.addr %s29, 2
          %s292 = smul.addr %s28, 16
          %s293 = sadd.s32 %s291, %s292
          %s294 = smul.addr %s293, 64
          %s295 = scalar_lea.hbm %s0, %s294
          %s296 = sshll.u32 %s287, 4
          %s297 = int_to_ptr.vmem [resolvable:$true] %s296
          %302 = dma.hbm_to_vmem [thread:$0]  %s295, 128, %s297, %s284, 64, 64, 4
        $region44: #{tpu_custom_call.1} parent=39 // pred_fallthru
          _
      $region40: #{tpu_custom_call.1} parent=5 // pred_fallthru
        _
      %p303 = scmp.le.s32.totalorder 1, %s21
      %p304 = scmp.lt.s32.totalorder %s21, 17
      %p305 = pnand %p303, %p304
      %p306 = pneg %p305
      // Predicated region
      $region45: #{tpu_custom_call.1} parent=5 // pred_check
        _
      $region46: #{tpu_custom_call.1} parent=5 // pred_check_branch
        %308 = sbr.rel (%p305) target = $region48
      $region47: #{tpu_custom_call.1} parent=5 // pred_region
        %s309 = ssub.s32 %s21, 1
        %s310 = sand.u32 %s48, 1
        %s311 = scalar_lea.sflag [#allocation4], %s310
        %s312 = sand.u32 %s48, 1
        %s313 = smul.addr %s312, 8
        %s314 = scalar_lea.vmem [#allocation3], %s313
        // Predicated region
        $region49: #{tpu_custom_call.1} parent=47 // pred_check
          %p315 = pneg %p61
        $region50: #{tpu_custom_call.1} parent=47 // pred_check_branch
          %317 = sbr.rel (%p315) target = $region52
        $region51: #{tpu_custom_call.1} parent=47 // pred_region
          %318 = dma.done %s311, 128
        $region52: #{tpu_custom_call.1} parent=47 // pred_fallthru
          _
        // Predicated region
        $region53: #{tpu_custom_call.1} parent=47 // pred_check
          %p319 = pneg %p82
        $region54: #{tpu_custom_call.1} parent=47 // pred_check_branch
          %321 = sbr.rel (%p319) target = $region56
        $region55: #{tpu_custom_call.1} parent=47 // pred_region
          %322 = dma.done [#allocation7], 192
        $region56: #{tpu_custom_call.1} parent=47 // pred_fallthru
          _
        // Predicated region
        $region57: #{tpu_custom_call.1} parent=47 // pred_check
          %p323 = pneg %p124
        $region58: #{tpu_custom_call.1} parent=47 // pred_check_branch
          %325 = sbr.rel (%p323) target = $region60
        $region59: #{tpu_custom_call.1} parent=47 // pred_region
          %326 = dma.done [#allocation7], 512
        $region60: #{tpu_custom_call.1} parent=47 // pred_fallthru
          _
        // Predicated region
        $region61: #{tpu_custom_call.1} parent=47 // pred_check
          %p327 = pneg %p166
        $region62: #{tpu_custom_call.1} parent=47 // pred_check_branch
          %329 = sbr.rel (%p327) target = $region64
        $region63: #{tpu_custom_call.1} parent=47 // pred_region
          %330 = dma.done [#allocation10], 8192
        $region64: #{tpu_custom_call.1} parent=47 // pred_fallthru
          _
        %s331 = sand.u32 %s48, 1
        %s332 = scalar_lea.sflag [#allocation4], %s331
        %s333 = sand.u32 %s48, 1
        %s334 = smul.addr %s333, 8
        %s335 = scalar_lea.vmem [#allocation3], %s334
        %p336 = pneg %p61
        %p337 = pneg %p58
        %p338 = pneg %p82
        %p339 = pneg %p79
        %p340 = pneg %p103
        %p341 = pneg %p100
        %p342 = pneg %p124
        %p343 = pneg %p121
        %p344 = pneg %p145
        %p345 = pneg %p142
        %p346 = pneg %p166
        %p347 = pneg %p163
        %p348 = pneg %p187
        %p349 = pneg %p184
        %p350 = pneg %p213
        %p351 = pneg %p210
        %s352 = sand.u32 %s200, 1
        %s353 = scalar_lea.sflag [#allocation5], %s352
        %s354 = sand.u32 %s200, 1
        %s355 = smul.addr %s354, 8
        %s356 = scalar_lea.vmem [#allocation11], %s355
        %v358 = vld [vmem:[%s314] sm:$0xf]
        %v359 = vld [vmem:[%s314 + $0x4] sm:$0xf]
        %v360 = vld [vmem:[#allocation6] sm:$0xf]
        %v361 = vld [vmem:[#allocation6 + $0x4] sm:$0xf]
        %v362 = vld [vmem:[#allocation6 + $0x8] sm:$0x1]
        %v363 = vld [vmem:[%s2] sm:$0x1]
        %v365 = vlaneseq
        %v366 = vshrl.u32 %v365, 7
        %v367 = vsub.s32 0, %v366
        %v368 = vrot.slane %v363, %v367
        %v372 = vunpack.c.l.b16 %v358
        %v373 = vunpack.c.l.b16 %v359
        %v374 = vpack.c.b16 %v373, %v372
        %v378 = vunpack.c.l.b16 %v360
        %v379 = vunpack.c.l.b16 %v361
        %v380 = vunpack.c.l.b16 %v362
        %v381 = vpack.c.b16 %v379, %v378
        %v382 = vpack.c.b16 %v380, %v380
        %vm384 = vcmask 146432
        %v386 = vsel %vm384, %v374, 0
        %vm388 = vcmask 1040384
        %v390 = vsel %vm388, %v382, 0
        %392 = vmatprep.subr.bf16.mxu0 0
        %393 = vmatpush1.bf16.msra.mxu0 0
        %394 = vmatprep.subr.bf16.mxu0 0
        %395 = vmatpush1.bf16.msra.mxu0 0
        %396 = vmatprep.subr.bf16.mxu0 0
        %397 = vmatpush1.bf16.msra.mxu0 0
        %398 = vmatprep.subr.bf16.mxu0 0
        %399 = vmatpush1.bf16.msra.mxu0 0
        %400 = vmatprep.subr.bf16.mxu0 0
        %401 = vmatpush1.bf16.msra.mxu0 0
        %402 = vmatprep.subr.bf16.mxu0 0
        %403 = vmatpush1.bf16.msra.mxu0 0
        %404 = vmatprep.subr.bf16.mxu0 0
        %405 = vmatpush1.bf16.msra.mxu0 %v390
        %406 = vmatprep.subr.bf16.mxu0 0
        %407 = vmatpush1.bf16.msra.mxu0 %v381
        %408 = vmatprep.subr.bf16.mxu0 0
        %409 = vmatpush2.bf16.msra.mxu0 0
        %410 = vmatprep.subr.bf16.mxu0 0
        %411 = vmatpush2.bf16.msra.mxu0 0
        %412 = vmatprep.subr.bf16.mxu0 0
        %413 = vmatpush2.bf16.msra.mxu0 0
        %414 = vmatprep.subr.bf16.mxu0 0
        %415 = vmatpush2.bf16.msra.mxu0 0
        %416 = vmatprep.subr.bf16.mxu0 0
        %417 = vmatpush2.bf16.msra.mxu0 0
        %418 = vmatprep.subr.bf16.mxu0 0
        %419 = vmatpush2.bf16.msra.mxu0 0
        %420 = vmatprep.subr.bf16.mxu0 0
        %421 = vmatpush2.bf16.msra.mxu0 0
        %422 = vmatprep.subr.bf16.mxu0 0
        %423 = vmatpush2.bf16.msra.mxu0 0
        %424 = vmatprep.mubr.bf16.mxu0 0
        %425 = vmatmul.mubr.bf16.gmra.mxu0 %v386
        %v426 = vpop.f32.mrf.mxu0
        %v427 = vadd.f32 %v368, %v426
        %v428 = vpop.f32.mrf.mxu0
        %v429 = vpop.f32.mrf.mxu0
        %v430 = vadd.f32 %v368, %v429
        %v431 = vpop.f32.mrf.mxu0
        %432 = vdwg.mxu0
        %v433 = vmul.f32 %v427, 0.2
        %v434 = vmul.f32 %v430, 0.2
        %v435 = vmax.f32 %v427, %v433
        %v436 = vmax.f32 %v430, %v434
        %v437 = vpack.c.bf16 %v436, %v435
        %v438 = vld [vmem:[#allocation8] sm:$0xf]
        %v439 = vld [vmem:[#allocation8 + $0x4] sm:$0xf]
        %v440 = vld [vmem:[#allocation8 + $0x8] sm:$0xf]
        %v441 = vld [vmem:[#allocation8 + $0xc] sm:$0xf]
        %v442 = vld [vmem:[#allocation8 + $0x10] sm:$0xf]
        %v443 = vld [vmem:[#allocation8 + $0x14] sm:$0xf]
        %v444 = vld [vmem:[#allocation8 + $0x18] sm:$0xf]
        %v445 = vld [vmem:[#allocation8 + $0x1c] sm:$0xf]
        %v446 = vld [vmem:[%s4] sm:$0x1]
        %v448 = vlaneseq
        %v449 = vshrl.u32 %v448, 7
        %v450 = vsub.s32 0, %v449
        %v451 = vrot.slane %v446, %v450
        %v461 = vunpack.c.l.b16 %v438
        %v462 = vunpack.c.l.b16 %v439
        %v463 = vunpack.c.l.b16 %v440
        %v464 = vunpack.c.l.b16 %v441
        %v465 = vunpack.c.l.b16 %v442
        %v466 = vunpack.c.l.b16 %v443
        %v467 = vunpack.c.l.b16 %v444
        %v468 = vunpack.c.l.b16 %v445
        %v469 = vpack.c.b16 %v462, %v461
        %v470 = vpack.c.b16 %v464, %v463
        %v471 = vpack.c.b16 %v466, %v465
        %v472 = vpack.c.b16 %v468, %v467
        %vm477 = vcmask 523264
        %v479 = vsel %vm477, %v437, 0
        %481 = vmatprep.subr.bf16.mxu0 0
        %482 = vmatpush1.bf16.msra.mxu0 0
        %483 = vmatprep.subr.bf16.mxu0 0
        %484 = vmatpush1.bf16.msra.mxu0 0
        %485 = vmatprep.subr.bf16.mxu0 0
        %486 = vmatpush1.bf16.msra.mxu0 0
        %487 = vmatprep.subr.bf16.mxu0 0
        %488 = vmatpush1.bf16.msra.mxu0 0
        %489 = vmatprep.subr.bf16.mxu0 0
        %490 = vmatpush1.bf16.msra.mxu0 %v472
        %491 = vmatprep.subr.bf16.mxu0 0
        %492 = vmatpush1.bf16.msra.mxu0 %v471
        %493 = vmatprep.subr.bf16.mxu0 0
        %494 = vmatpush1.bf16.msra.mxu0 %v470
        %495 = vmatprep.subr.bf16.mxu0 0
        %496 = vmatpush1.bf16.msra.mxu0 %v469
        %497 = vmatprep.subr.bf16.mxu0 0
        %498 = vmatpush2.bf16.msra.mxu0 0
        %499 = vmatprep.subr.bf16.mxu0 0
        %500 = vmatpush2.bf16.msra.mxu0 0
        %501 = vmatprep.subr.bf16.mxu0 0
        %502 = vmatpush2.bf16.msra.mxu0 0
        %503 = vmatprep.subr.bf16.mxu0 0
        %504 = vmatpush2.bf16.msra.mxu0 0
        %505 = vmatprep.subr.bf16.mxu0 0
        %506 = vmatpush2.bf16.msra.mxu0 0
        %507 = vmatprep.subr.bf16.mxu0 0
        %508 = vmatpush2.bf16.msra.mxu0 0
        %509 = vmatprep.subr.bf16.mxu0 0
        %510 = vmatpush2.bf16.msra.mxu0 0
        %511 = vmatprep.subr.bf16.mxu0 0
        %512 = vmatpush2.bf16.msra.mxu0 0
        %513 = vmatprep.mubr.bf16.mxu0 0
        %514 = vmatmul.mubr.bf16.gmra.mxu0 %v479
        %v515 = vpop.f32.mrf.mxu0
        %v516 = vadd.f32 %v451, %v515
        %v517 = vpop.f32.mrf.mxu0
        %v518 = vpop.f32.mrf.mxu0
        %v519 = vadd.f32 %v451, %v518
        %v520 = vpop.f32.mrf.mxu0
        %521 = vdwg.mxu0
        %v522 = vmul.f32 %v516, 0.2
        %v523 = vmul.f32 %v519, 0.2
        %v524 = vmax.f32 %v516, %v522
        %v525 = vmax.f32 %v519, %v523
        %p526 = scmp.eq.s32.totalorder %s31, 0
        // Predicated region
        $region65: #{tpu_custom_call.1} parent=47 // pred_check
          %p527 = pneg %p526
        $region66: #{tpu_custom_call.1} parent=47 // pred_check_branch
          %529 = sbr.rel (%p527) target = $region68
        $region67: #{tpu_custom_call.1} parent=47 // pred_region
          %530 = vst [vmem:[#allocation2] sm:$0xff] %v524
          %531 = vst [vmem:[#allocation2 + $0x8] sm:$0xff] %v525
        $region68: #{tpu_custom_call.1} parent=47 // pred_fallthru
          _
        %p532 = scmp.gt.s32.totalorder %s31, 0
        // Predicated region
        $region69: #{tpu_custom_call.1} parent=47 // pred_check
          %p533 = pneg %p532
        $region70: #{tpu_custom_call.1} parent=47 // pred_check_branch
          %535 = sbr.rel (%p533) target = $region72
        $region71: #{tpu_custom_call.1} parent=47 // pred_region
          %v536 = vld [vmem:[#allocation2] sm:$0xff]
          %v537 = vld [vmem:[#allocation2 + $0x8] sm:$0xff]
          %v538 = vmax.f32 %v536, %v524
          %v539 = vmax.f32 %v537, %v525
          %540 = vst [vmem:[#allocation2] sm:$0xff] %v538
          %541 = vst [vmem:[#allocation2 + $0x8] sm:$0xff] %v539
        $region72: #{tpu_custom_call.1} parent=47 // pred_fallthru
          _
        %p542 = scmp.eq.s32.totalorder %s31, 7
        // Predicated region
        $region73: #{tpu_custom_call.1} parent=47 // pred_check
          %p543 = pneg %p542
        $region74: #{tpu_custom_call.1} parent=47 // pred_check_branch
          %545 = sbr.rel (%p543) target = $region76
        $region75: #{tpu_custom_call.1} parent=47 // pred_region
          %v546 = vld [vmem:[#allocation2] sm:$0xff]
          %v547 = vld [vmem:[#allocation2 + $0x8] sm:$0xff]
          %v548 = vpack.c.bf16 %v547, %v546
          %v549 = vld [vmem:[#allocation9] sm:$0xff]
          %v550 = vld [vmem:[#allocation9 + $0x8] sm:$0xff]
          %v551 = vld [vmem:[#allocation9 + $0x10] sm:$0xff]
          %v552 = vld [vmem:[#allocation9 + $0x18] sm:$0xff]
          %v553 = vld [vmem:[#allocation9 + $0x20] sm:$0xff]
          %v554 = vld [vmem:[#allocation9 + $0x28] sm:$0xff]
          %v555 = vld [vmem:[#allocation9 + $0x30] sm:$0xff]
          %v556 = vld [vmem:[#allocation9 + $0x38] sm:$0xff]
          %v557 = vld [vmem:[#allocation9 + $0x40] sm:$0xff]
          %v558 = vld [vmem:[#allocation9 + $0x48] sm:$0xff]
          %v559 = vld [vmem:[#allocation9 + $0x50] sm:$0xff]
          %v560 = vld [vmem:[#allocation9 + $0x58] sm:$0xff]
          %v561 = vld [vmem:[#allocation9 + $0x60] sm:$0xff]
          %v562 = vld [vmem:[#allocation9 + $0x68] sm:$0xff]
          %v563 = vld [vmem:[#allocation9 + $0x70] sm:$0xff]
          %v564 = vld [vmem:[#allocation9 + $0x78] sm:$0xff]
          %v565 = vld [vmem:[#allocation9 + $0x80] sm:$0xff]
          %v566 = vld [vmem:[#allocation9 + $0x88] sm:$0xff]
          %v567 = vld [vmem:[#allocation9 + $0x90] sm:$0xff]
          %v568 = vld [vmem:[#allocation9 + $0x98] sm:$0xff]
          %v569 = vld [vmem:[#allocation9 + $0xa0] sm:$0xff]
          %v570 = vld [vmem:[#allocation9 + $0xa8] sm:$0xff]
          %v571 = vld [vmem:[#allocation9 + $0xb0] sm:$0xff]
          %v572 = vld [vmem:[#allocation9 + $0xb8] sm:$0xff]
          %v573 = vld [vmem:[#allocation9 + $0xc0] sm:$0xff]
          %v574 = vld [vmem:[#allocation9 + $0xc8] sm:$0xff]
          %v575 = vld [vmem:[#allocation9 + $0xd0] sm:$0xff]
          %v576 = vld [vmem:[#allocation9 + $0xd8] sm:$0xff]
          %v577 = vld [vmem:[#allocation9 + $0xe0] sm:$0xff]
          %v578 = vld [vmem:[#allocation9 + $0xe8] sm:$0xff]
          %v579 = vld [vmem:[#allocation9 + $0xf0] sm:$0xff]
          %v580 = vld [vmem:[#allocation9 + $0xf8] sm:$0xff]
          %v581 = vld [vmem:[#allocation9 + $0x100] sm:$0xff]
          %v582 = vld [vmem:[#allocation9 + $0x108] sm:$0xff]
          %v583 = vld [vmem:[#allocation9 + $0x110] sm:$0xff]
          %v584 = vld [vmem:[#allocation9 + $0x118] sm:$0xff]
          %v585 = vld [vmem:[#allocation9 + $0x120] sm:$0xff]
          %v586 = vld [vmem:[#allocation9 + $0x128] sm:$0xff]
          %v587 = vld [vmem:[#allocation9 + $0x130] sm:$0xff]
          %v588 = vld [vmem:[#allocation9 + $0x138] sm:$0xff]
          %v589 = vld [vmem:[#allocation9 + $0x140] sm:$0xff]
          %v590 = vld [vmem:[#allocation9 + $0x148] sm:$0xff]
          %v591 = vld [vmem:[#allocation9 + $0x150] sm:$0xff]
          %v592 = vld [vmem:[#allocation9 + $0x158] sm:$0xff]
          %v593 = vld [vmem:[#allocation9 + $0x160] sm:$0xff]
          %v594 = vld [vmem:[#allocation9 + $0x168] sm:$0xff]
          %v595 = vld [vmem:[#allocation9 + $0x170] sm:$0xff]
          %v596 = vld [vmem:[#allocation9 + $0x178] sm:$0xff]
          %v597 = vld [vmem:[#allocation9 + $0x180] sm:$0xff]
          %v598 = vld [vmem:[#allocation9 + $0x188] sm:$0xff]
          %v599 = vld [vmem:[#allocation9 + $0x190] sm:$0xff]
          %v600 = vld [vmem:[#allocation9 + $0x198] sm:$0xff]
          %v601 = vld [vmem:[#allocation9 + $0x1a0] sm:$0xff]
          %v602 = vld [vmem:[#allocation9 + $0x1a8] sm:$0xff]
          %v603 = vld [vmem:[#allocation9 + $0x1b0] sm:$0xff]
          %v604 = vld [vmem:[#allocation9 + $0x1b8] sm:$0xff]
          %v605 = vld [vmem:[#allocation9 + $0x1c0] sm:$0xff]
          %v606 = vld [vmem:[#allocation9 + $0x1c8] sm:$0xff]
          %v607 = vld [vmem:[#allocation9 + $0x1d0] sm:$0xff]
          %v608 = vld [vmem:[#allocation9 + $0x1d8] sm:$0xff]
          %v609 = vld [vmem:[#allocation9 + $0x1e0] sm:$0xff]
          %v610 = vld [vmem:[#allocation9 + $0x1e8] sm:$0xff]
          %v611 = vld [vmem:[#allocation9 + $0x1f0] sm:$0xff]
          %v612 = vld [vmem:[#allocation9 + $0x1f8] sm:$0xff]
          %v613 = vld [vmem:[%s6] sm:$0xff]
          %v615 = vlaneseq
          %v616 = vshrl.u32 %v615, 7
          %v617 = vsub.s32 0, %v616
          %v618 = vrot.slane %v613, %v617
          %v619 = vlaneseq
          %v620 = vshrl.u32 %v619, 7
          %v621 = vsub.s32 1, %v620
          %v622 = vrot.slane %v613, %v621
          %v623 = vlaneseq
          %v624 = vshrl.u32 %v623, 7
          %v625 = vsub.s32 2, %v624
          %v626 = vrot.slane %v613, %v625
          %v627 = vlaneseq
          %v628 = vshrl.u32 %v627, 7
          %v629 = vsub.s32 3, %v628
          %v630 = vrot.slane %v613, %v629
          %v631 = vlaneseq
          %v632 = vshrl.u32 %v631, 7
          %v633 = vsub.s32 4, %v632
          %v634 = vrot.slane %v613, %v633
          %v635 = vlaneseq
          %v636 = vshrl.u32 %v635, 7
          %v637 = vsub.s32 5, %v636
          %v638 = vrot.slane %v613, %v637
          %v639 = vlaneseq
          %v640 = vshrl.u32 %v639, 7
          %v641 = vsub.s32 6, %v640
          %v642 = vrot.slane %v613, %v641
          %v643 = vlaneseq
          %v644 = vshrl.u32 %v643, 7
          %v645 = vsub.s32 7, %v644
          %v646 = vrot.slane %v613, %v645
          %v719 = vunpack.c.l.b16 %v549
          %v720 = vunpack.c.h.b16 %v549
          %v721 = vunpack.c.l.b16 %v550
          %v722 = vunpack.c.h.b16 %v550
          %v723 = vunpack.c.l.b16 %v551
          %v724 = vunpack.c.h.b16 %v551
          %v725 = vunpack.c.l.b16 %v552
          %v726 = vunpack.c.h.b16 %v552
          %v727 = vunpack.c.l.b16 %v553
          %v728 = vunpack.c.h.b16 %v553
          %v729 = vunpack.c.l.b16 %v554
          %v730 = vunpack.c.h.b16 %v554
          %v731 = vunpack.c.l.b16 %v555
          %v732 = vunpack.c.h.b16 %v555
          %v733 = vunpack.c.l.b16 %v556
          %v734 = vunpack.c.h.b16 %v556
          %v735 = vunpack.c.l.b16 %v557
          %v736 = vunpack.c.h.b16 %v557
          %v737 = vunpack.c.l.b16 %v558
          %v738 = vunpack.c.h.b16 %v558
          %v739 = vunpack.c.l.b16 %v559
          %v740 = vunpack.c.h.b16 %v559
          %v741 = vunpack.c.l.b16 %v560
          %v742 = vunpack.c.h.b16 %v560
          %v743 = vunpack.c.l.b16 %v561
          %v744 = vunpack.c.h.b16 %v561
          %v745 = vunpack.c.l.b16 %v562
          %v746 = vunpack.c.h.b16 %v562
          %v747 = vunpack.c.l.b16 %v563
          %v748 = vunpack.c.h.b16 %v563
          %v749 = vunpack.c.l.b16 %v564
          %v750 = vunpack.c.h.b16 %v564
          %v751 = vunpack.c.l.b16 %v565
          %v752 = vunpack.c.h.b16 %v565
          %v753 = vunpack.c.l.b16 %v566
          %v754 = vunpack.c.h.b16 %v566
          %v755 = vunpack.c.l.b16 %v567
          %v756 = vunpack.c.h.b16 %v567
          %v757 = vunpack.c.l.b16 %v568
          %v758 = vunpack.c.h.b16 %v568
          %v759 = vunpack.c.l.b16 %v569
          %v760 = vunpack.c.h.b16 %v569
          %v761 = vunpack.c.l.b16 %v570
          %v762 = vunpack.c.h.b16 %v570
          %v763 = vunpack.c.l.b16 %v571
          %v764 = vunpack.c.h.b16 %v571
          %v765 = vunpack.c.l.b16 %v572
          %v766 = vunpack.c.h.b16 %v572
          %v767 = vunpack.c.l.b16 %v573
          %v768 = vunpack.c.h.b16 %v573
          %v769 = vunpack.c.l.b16 %v574
          %v770 = vunpack.c.h.b16 %v574
          %v771 = vunpack.c.l.b16 %v575
          %v772 = vunpack.c.h.b16 %v575
          %v773 = vunpack.c.l.b16 %v576
          %v774 = vunpack.c.h.b16 %v576
          %v775 = vunpack.c.l.b16 %v577
          %v776 = vunpack.c.h.b16 %v577
          %v777 = vunpack.c.l.b16 %v578
          %v778 = vunpack.c.h.b16 %v578
          %v779 = vunpack.c.l.b16 %v579
          %v780 = vunpack.c.h.b16 %v579
          %v781 = vunpack.c.l.b16 %v580
          %v782 = vunpack.c.h.b16 %v580
          %v783 = vunpack.c.l.b16 %v581
          %v784 = vunpack.c.h.b16 %v581
          %v785 = vunpack.c.l.b16 %v582
          %v786 = vunpack.c.h.b16 %v582
          %v787 = vunpack.c.l.b16 %v583
          %v788 = vunpack.c.h.b16 %v583
          %v789 = vunpack.c.l.b16 %v584
          %v790 = vunpack.c.h.b16 %v584
          %v791 = vunpack.c.l.b16 %v585
          %v792 = vunpack.c.h.b16 %v585
          %v793 = vunpack.c.l.b16 %v586
          %v794 = vunpack.c.h.b16 %v586
          %v795 = vunpack.c.l.b16 %v587
          %v796 = vunpack.c.h.b16 %v587
          %v797 = vunpack.c.l.b16 %v588
          %v798 = vunpack.c.h.b16 %v588
          %v799 = vunpack.c.l.b16 %v589
          %v800 = vunpack.c.h.b16 %v589
          %v801 = vunpack.c.l.b16 %v590
          %v802 = vunpack.c.h.b16 %v590
          %v803 = vunpack.c.l.b16 %v591
          %v804 = vunpack.c.h.b16 %v591
          %v805 = vunpack.c.l.b16 %v592
          %v806 = vunpack.c.h.b16 %v592
          %v807 = vunpack.c.l.b16 %v593
          %v808 = vunpack.c.h.b16 %v593
          %v809 = vunpack.c.l.b16 %v594
          %v810 = vunpack.c.h.b16 %v594
          %v811 = vunpack.c.l.b16 %v595
          %v812 = vunpack.c.h.b16 %v595
          %v813 = vunpack.c.l.b16 %v596
          %v814 = vunpack.c.h.b16 %v596
          %v815 = vunpack.c.l.b16 %v597
          %v816 = vunpack.c.h.b16 %v597
          %v817 = vunpack.c.l.b16 %v598
          %v818 = vunpack.c.h.b16 %v598
          %v819 = vunpack.c.l.b16 %v599
          %v820 = vunpack.c.h.b16 %v599
          %v821 = vunpack.c.l.b16 %v600
          %v822 = vunpack.c.h.b16 %v600
          %v823 = vunpack.c.l.b16 %v601
          %v824 = vunpack.c.h.b16 %v601
          %v825 = vunpack.c.l.b16 %v602
          %v826 = vunpack.c.h.b16 %v602
          %v827 = vunpack.c.l.b16 %v603
          %v828 = vunpack.c.h.b16 %v603
          %v829 = vunpack.c.l.b16 %v604
          %v830 = vunpack.c.h.b16 %v604
          %v831 = vunpack.c.l.b16 %v605
          %v832 = vunpack.c.h.b16 %v605
          %v833 = vunpack.c.l.b16 %v606
          %v834 = vunpack.c.h.b16 %v606
          %v835 = vunpack.c.l.b16 %v607
          %v836 = vunpack.c.h.b16 %v607
          %v837 = vunpack.c.l.b16 %v608
          %v838 = vunpack.c.h.b16 %v608
          %v839 = vunpack.c.l.b16 %v609
          %v840 = vunpack.c.h.b16 %v609
          %v841 = vunpack.c.l.b16 %v610
          %v842 = vunpack.c.h.b16 %v610
          %v843 = vunpack.c.l.b16 %v611
          %v844 = vunpack.c.h.b16 %v611
          %v845 = vunpack.c.l.b16 %v612
          %v846 = vunpack.c.h.b16 %v612
          %v847 = vpack.c.b16 %v727, %v719
          %v848 = vpack.c.b16 %v728, %v720
          %v849 = vpack.c.b16 %v729, %v721
          %v850 = vpack.c.b16 %v730, %v722
          %v851 = vpack.c.b16 %v731, %v723
          %v852 = vpack.c.b16 %v732, %v724
          %v853 = vpack.c.b16 %v733, %v725
          %v854 = vpack.c.b16 %v734, %v726
          %v855 = vpack.c.b16 %v743, %v735
          %v856 = vpack.c.b16 %v744, %v736
          %v857 = vpack.c.b16 %v745, %v737
          %v858 = vpack.c.b16 %v746, %v738
          %v859 = vpack.c.b16 %v747, %v739
          %v860 = vpack.c.b16 %v748, %v740
          %v861 = vpack.c.b16 %v749, %v741
          %v862 = vpack.c.b16 %v750, %v742
          %v863 = vpack.c.b16 %v759, %v751
          %v864 = vpack.c.b16 %v760, %v752
          %v865 = vpack.c.b16 %v761, %v753
          %v866 = vpack.c.b16 %v762, %v754
          %v867 = vpack.c.b16 %v763, %v755
          %v868 = vpack.c.b16 %v764, %v756
          %v869 = vpack.c.b16 %v765, %v757
          %v870 = vpack.c.b16 %v766, %v758
          %v871 = vpack.c.b16 %v775, %v767
          %v872 = vpack.c.b16 %v776, %v768
          %v873 = vpack.c.b16 %v777, %v769
          %v874 = vpack.c.b16 %v778, %v770
          %v875 = vpack.c.b16 %v779, %v771
          %v876 = vpack.c.b16 %v780, %v772
          %v877 = vpack.c.b16 %v781, %v773
          %v878 = vpack.c.b16 %v782, %v774
          %v879 = vpack.c.b16 %v791, %v783
          %v880 = vpack.c.b16 %v792, %v784
          %v881 = vpack.c.b16 %v793, %v785
          %v882 = vpack.c.b16 %v794, %v786
          %v883 = vpack.c.b16 %v795, %v787
          %v884 = vpack.c.b16 %v796, %v788
          %v885 = vpack.c.b16 %v797, %v789
          %v886 = vpack.c.b16 %v798, %v790
          %v887 = vpack.c.b16 %v807, %v799
          %v888 = vpack.c.b16 %v808, %v800
          %v889 = vpack.c.b16 %v809, %v801
          %v890 = vpack.c.b16 %v810, %v802
          %v891 = vpack.c.b16 %v811, %v803
          %v892 = vpack.c.b16 %v812, %v804
          %v893 = vpack.c.b16 %v813, %v805
          %v894 = vpack.c.b16 %v814, %v806
          %v895 = vpack.c.b16 %v823, %v815
          %v896 = vpack.c.b16 %v824, %v816
          %v897 = vpack.c.b16 %v825, %v817
          %v898 = vpack.c.b16 %v826, %v818
          %v899 = vpack.c.b16 %v827, %v819
          %v900 = vpack.c.b16 %v828, %v820
          %v901 = vpack.c.b16 %v829, %v821
          %v902 = vpack.c.b16 %v830, %v822
          %v903 = vpack.c.b16 %v839, %v831
          %v904 = vpack.c.b16 %v840, %v832
          %v905 = vpack.c.b16 %v841, %v833
          %v906 = vpack.c.b16 %v842, %v834
          %v907 = vpack.c.b16 %v843, %v835
          %v908 = vpack.c.b16 %v844, %v836
          %v909 = vpack.c.b16 %v845, %v837
          %v910 = vpack.c.b16 %v846, %v838
          %975 = vmatprep.subr.bf16.mxu0 %v904
          %976 = vmatpush1.bf16.msra.mxu0 %v903
          %977 = vmatprep.subr.bf16.mxu0 %v896
          %978 = vmatpush1.bf16.msra.mxu0 %v895
          %979 = vmatprep.subr.bf16.mxu0 %v888
          %980 = vmatpush1.bf16.msra.mxu0 %v887
          %981 = vmatprep.subr.bf16.mxu0 %v880
          %982 = vmatpush1.bf16.msra.mxu0 %v879
          %983 = vmatprep.subr.bf16.mxu0 %v872
          %984 = vmatpush1.bf16.msra.mxu0 %v871
          %985 = vmatprep.subr.bf16.mxu0 %v864
          %986 = vmatpush1.bf16.msra.mxu0 %v863
          %987 = vmatprep.subr.bf16.mxu0 %v856
          %988 = vmatpush1.bf16.msra.mxu0 %v855
          %989 = vmatprep.subr.bf16.mxu0 %v848
          %990 = vmatpush1.bf16.msra.mxu0 %v847
          %991 = vmatprep.subr.bf16.mxu0 0
          %992 = vmatpush2.bf16.msra.mxu0 0
          %993 = vmatprep.subr.bf16.mxu0 0
          %994 = vmatpush2.bf16.msra.mxu0 0
          %995 = vmatprep.subr.bf16.mxu0 0
          %996 = vmatpush2.bf16.msra.mxu0 0
          %997 = vmatprep.subr.bf16.mxu0 0
          %998 = vmatpush2.bf16.msra.mxu0 0
          %999 = vmatprep.subr.bf16.mxu0 0
          %1000 = vmatpush2.bf16.msra.mxu0 0
          %1001 = vmatprep.subr.bf16.mxu0 0
          %1002 = vmatpush2.bf16.msra.mxu0 0
          %1003 = vmatprep.subr.bf16.mxu0 0
          %1004 = vmatpush2.bf16.msra.mxu0 0
          %1005 = vmatprep.subr.bf16.mxu0 0
          %1006 = vmatpush2.bf16.msra.mxu0 0
          %1007 = vmatprep.mubr.bf16.mxu0 0
          %1008 = vmatmul.mubr.bf16.gmra.mxu0 %v548
          %v1009 = vpop.f32.mrf.mxu0
          %v1010 = vadd.f32 %v618, %v1009
          %v1011 = vpop.f32.mrf.mxu0
          %v1012 = vadd.f32 %v622, %v1011
          %v1013 = vpop.f32.mrf.mxu0
          %v1014 = vadd.f32 %v618, %v1013
          %v1015 = vpop.f32.mrf.mxu0
          %v1016 = vadd.f32 %v622, %v1015
          %1017 = vdwg.mxu0
          %1018 = vmatprep.subr.bf16.mxu0 %v906
          %1019 = vmatpush1.bf16.msra.mxu0 %v905
          %1020 = vmatprep.subr.bf16.mxu0 %v898
          %1021 = vmatpush1.bf16.msra.mxu0 %v897
          %1022 = vmatprep.subr.bf16.mxu0 %v890
          %1023 = vmatpush1.bf16.msra.mxu0 %v889
          %1024 = vmatprep.subr.bf16.mxu0 %v882
          %1025 = vmatpush1.bf16.msra.mxu0 %v881
          %1026 = vmatprep.subr.bf16.mxu0 %v874
          %1027 = vmatpush1.bf16.msra.mxu0 %v873
          %1028 = vmatprep.subr.bf16.mxu0 %v866
          %1029 = vmatpush1.bf16.msra.mxu0 %v865
          %1030 = vmatprep.subr.bf16.mxu0 %v858
          %1031 = vmatpush1.bf16.msra.mxu0 %v857
          %1032 = vmatprep.subr.bf16.mxu0 %v850
          %1033 = vmatpush1.bf16.msra.mxu0 %v849
          %1034 = vmatprep.subr.bf16.mxu0 0
          %1035 = vmatpush2.bf16.msra.mxu0 0
          %1036 = vmatprep.subr.bf16.mxu0 0
          %1037 = vmatpush2.bf16.msra.mxu0 0
          %1038 = vmatprep.subr.bf16.mxu0 0
          %1039 = vmatpush2.bf16.msra.mxu0 0
          %1040 = vmatprep.subr.bf16.mxu0 0
          %1041 = vmatpush2.bf16.msra.mxu0 0
          %1042 = vmatprep.subr.bf16.mxu0 0
          %1043 = vmatpush2.bf16.msra.mxu0 0
          %1044 = vmatprep.subr.bf16.mxu0 0
          %1045 = vmatpush2.bf16.msra.mxu0 0
          %1046 = vmatprep.subr.bf16.mxu0 0
          %1047 = vmatpush2.bf16.msra.mxu0 0
          %1048 = vmatprep.subr.bf16.mxu0 0
          %1049 = vmatpush2.bf16.msra.mxu0 0
          %1050 = vmatprep.mubr.bf16.mxu0 0
          %1051 = vmatmul.mubr.bf16.gmra.mxu0 %v548
          %v1052 = vpop.f32.mrf.mxu0
          %v1053 = vadd.f32 %v626, %v1052
          %v1054 = vpop.f32.mrf.mxu0
          %v1055 = vadd.f32 %v630, %v1054
          %v1056 = vpop.f32.mrf.mxu0
          %v1057 = vadd.f32 %v626, %v1056
          %v1058 = vpop.f32.mrf.mxu0
          %v1059 = vadd.f32 %v630, %v1058
          %1060 = vdwg.mxu0
          %1061 = vmatprep.subr.bf16.mxu0 %v908
          %1062 = vmatpush1.bf16.msra.mxu0 %v907
          %1063 = vmatprep.subr.bf16.mxu0 %v900
          %1064 = vmatpush1.bf16.msra.mxu0 %v899
          %1065 = vmatprep.subr.bf16.mxu0 %v892
          %1066 = vmatpush1.bf16.msra.mxu0 %v891
          %1067 = vmatprep.subr.bf16.mxu0 %v884
          %1068 = vmatpush1.bf16.msra.mxu0 %v883
          %1069 = vmatprep.subr.bf16.mxu0 %v876
          %1070 = vmatpush1.bf16.msra.mxu0 %v875
          %1071 = vmatprep.subr.bf16.mxu0 %v868
          %1072 = vmatpush1.bf16.msra.mxu0 %v867
          %1073 = vmatprep.subr.bf16.mxu0 %v860
          %1074 = vmatpush1.bf16.msra.mxu0 %v859
          %1075 = vmatprep.subr.bf16.mxu0 %v852
          %1076 = vmatpush1.bf16.msra.mxu0 %v851
          %1077 = vmatprep.subr.bf16.mxu0 0
          %1078 = vmatpush2.bf16.msra.mxu0 0
          %1079 = vmatprep.subr.bf16.mxu0 0
          %1080 = vmatpush2.bf16.msra.mxu0 0
          %1081 = vmatprep.subr.bf16.mxu0 0
          %1082 = vmatpush2.bf16.msra.mxu0 0
          %1083 = vmatprep.subr.bf16.mxu0 0
          %1084 = vmatpush2.bf16.msra.mxu0 0
          %1085 = vmatprep.subr.bf16.mxu0 0
          %1086 = vmatpush2.bf16.msra.mxu0 0
          %1087 = vmatprep.subr.bf16.mxu0 0
          %1088 = vmatpush2.bf16.msra.mxu0 0
          %1089 = vmatprep.subr.bf16.mxu0 0
          %1090 = vmatpush2.bf16.msra.mxu0 0
          %1091 = vmatprep.subr.bf16.mxu0 0
          %1092 = vmatpush2.bf16.msra.mxu0 0
          %1093 = vmatprep.mubr.bf16.mxu0 0
          %1094 = vmatmul.mubr.bf16.gmra.mxu0 %v548
          %v1095 = vpop.f32.mrf.mxu0
          %v1096 = vadd.f32 %v634, %v1095
          %v1097 = vpop.f32.mrf.mxu0
          %v1098 = vadd.f32 %v638, %v1097
          %v1099 = vpop.f32.mrf.mxu0
          %v1100 = vadd.f32 %v634, %v1099
          %v1101 = vpop.f32.mrf.mxu0
          %v1102 = vadd.f32 %v638, %v1101
          %1103 = vdwg.mxu0
          %1104 = vmatprep.subr.bf16.mxu0 %v910
          %1105 = vmatpush1.bf16.msra.mxu0 %v909
          %1106 = vmatprep.subr.bf16.mxu0 %v902
          %1107 = vmatpush1.bf16.msra.mxu0 %v901
          %1108 = vmatprep.subr.bf16.mxu0 %v894
          %1109 = vmatpush1.bf16.msra.mxu0 %v893
          %1110 = vmatprep.subr.bf16.mxu0 %v886
          %1111 = vmatpush1.bf16.msra.mxu0 %v885
          %1112 = vmatprep.subr.bf16.mxu0 %v878
          %1113 = vmatpush1.bf16.msra.mxu0 %v877
          %1114 = vmatprep.subr.bf16.mxu0 %v870
          %1115 = vmatpush1.bf16.msra.mxu0 %v869
          %1116 = vmatprep.subr.bf16.mxu0 %v862
          %1117 = vmatpush1.bf16.msra.mxu0 %v861
          %1118 = vmatprep.subr.bf16.mxu0 %v854
          %1119 = vmatpush1.bf16.msra.mxu0 %v853
          %1120 = vmatprep.subr.bf16.mxu0 0
          %1121 = vmatpush2.bf16.msra.mxu0 0
          %1122 = vmatprep.subr.bf16.mxu0 0
          %1123 = vmatpush2.bf16.msra.mxu0 0
          %1124 = vmatprep.subr.bf16.mxu0 0
          %1125 = vmatpush2.bf16.msra.mxu0 0
          %1126 = vmatprep.subr.bf16.mxu0 0
          %1127 = vmatpush2.bf16.msra.mxu0 0
          %1128 = vmatprep.subr.bf16.mxu0 0
          %1129 = vmatpush2.bf16.msra.mxu0 0
          %1130 = vmatprep.subr.bf16.mxu0 0
          %1131 = vmatpush2.bf16.msra.mxu0 0
          %1132 = vmatprep.subr.bf16.mxu0 0
          %1133 = vmatpush2.bf16.msra.mxu0 0
          %1134 = vmatprep.subr.bf16.mxu0 0
          %1135 = vmatpush2.bf16.msra.mxu0 0
          %1136 = vmatprep.mubr.bf16.mxu0 0
          %1137 = vmatmul.mubr.bf16.gmra.mxu0 %v548
          %v1138 = vpop.f32.mrf.mxu0
          %v1139 = vadd.f32 %v642, %v1138
          %v1140 = vpop.f32.mrf.mxu0
          %v1141 = vadd.f32 %v646, %v1140
          %v1142 = vpop.f32.mrf.mxu0
          %v1143 = vadd.f32 %v642, %v1142
          %v1144 = vpop.f32.mrf.mxu0
          %v1145 = vadd.f32 %v646, %v1144
          %1146 = vdwg.mxu0
          %v1147 = vmul.f32 %v1010, 0.2
          %v1148 = vmul.f32 %v1012, 0.2
          %v1149 = vmul.f32 %v1053, 0.2
          %v1150 = vmul.f32 %v1055, 0.2
          %v1151 = vmul.f32 %v1096, 0.2
          %v1152 = vmul.f32 %v1098, 0.2
          %v1153 = vmul.f32 %v1139, 0.2
          %v1154 = vmul.f32 %v1141, 0.2
          %v1155 = vmul.f32 %v1014, 0.2
          %v1156 = vmul.f32 %v1016, 0.2
          %v1157 = vmul.f32 %v1057, 0.2
          %v1158 = vmul.f32 %v1059, 0.2
          %v1159 = vmul.f32 %v1100, 0.2
          %v1160 = vmul.f32 %v1102, 0.2
          %v1161 = vmul.f32 %v1143, 0.2
          %v1162 = vmul.f32 %v1145, 0.2
          %v1163 = vmax.f32 %v1010, %v1147
          %v1164 = vmax.f32 %v1012, %v1148
          %v1165 = vmax.f32 %v1053, %v1149
          %v1166 = vmax.f32 %v1055, %v1150
          %v1167 = vmax.f32 %v1096, %v1151
          %v1168 = vmax.f32 %v1098, %v1152
          %v1169 = vmax.f32 %v1139, %v1153
          %v1170 = vmax.f32 %v1141, %v1154
          %v1171 = vmax.f32 %v1014, %v1155
          %v1172 = vmax.f32 %v1016, %v1156
          %v1173 = vmax.f32 %v1057, %v1157
          %v1174 = vmax.f32 %v1059, %v1158
          %v1175 = vmax.f32 %v1100, %v1159
          %v1176 = vmax.f32 %v1102, %v1160
          %v1177 = vmax.f32 %v1143, %v1161
          %v1178 = vmax.f32 %v1145, %v1162
          %v1179 = vmax.f32 %v1163, %v1171
          %v1180 = vrot.slane %v1179, 4
          %v1181 = vmax.f32 %v1179, %v1180
          %v1182 = vrot.slane %v1181, 2
          %v1183 = vmax.f32 %v1181, %v1182
          %v1184 = vrot.slane %v1183, 1
          %v1185 = vmax.f32 %v1183, %v1184
          %v1186 = vmax.f32 %v1164, %v1172
          %v1187 = vrot.slane %v1186, 4
          %v1188 = vmax.f32 %v1186, %v1187
          %v1189 = vrot.slane %v1188, 2
          %v1190 = vmax.f32 %v1188, %v1189
          %v1191 = vrot.slane %v1190, 1
          %v1192 = vmax.f32 %v1190, %v1191
          %v1193 = vmax.f32 %v1165, %v1173
          %v1194 = vrot.slane %v1193, 4
          %v1195 = vmax.f32 %v1193, %v1194
          %v1196 = vrot.slane %v1195, 2
          %v1197 = vmax.f32 %v1195, %v1196
          %v1198 = vrot.slane %v1197, 1
          %v1199 = vmax.f32 %v1197, %v1198
          %v1200 = vmax.f32 %v1166, %v1174
          %v1201 = vrot.slane %v1200, 4
          %v1202 = vmax.f32 %v1200, %v1201
          %v1203 = vrot.slane %v1202, 2
          %v1204 = vmax.f32 %v1202, %v1203
          %v1205 = vrot.slane %v1204, 1
          %v1206 = vmax.f32 %v1204, %v1205
          %v1207 = vmax.f32 %v1167, %v1175
          %v1208 = vrot.slane %v1207, 4
          %v1209 = vmax.f32 %v1207, %v1208
          %v1210 = vrot.slane %v1209, 2
          %v1211 = vmax.f32 %v1209, %v1210
          %v1212 = vrot.slane %v1211, 1
          %v1213 = vmax.f32 %v1211, %v1212
          %v1214 = vmax.f32 %v1168, %v1176
          %v1215 = vrot.slane %v1214, 4
          %v1216 = vmax.f32 %v1214, %v1215
          %v1217 = vrot.slane %v1216, 2
          %v1218 = vmax.f32 %v1216, %v1217
          %v1219 = vrot.slane %v1218, 1
          %v1220 = vmax.f32 %v1218, %v1219
          %v1221 = vmax.f32 %v1169, %v1177
          %v1222 = vrot.slane %v1221, 4
          %v1223 = vmax.f32 %v1221, %v1222
          %v1224 = vrot.slane %v1223, 2
          %v1225 = vmax.f32 %v1223, %v1224
          %v1226 = vrot.slane %v1225, 1
          %v1227 = vmax.f32 %v1225, %v1226
          %v1228 = vmax.f32 %v1170, %v1178
          %v1229 = vrot.slane %v1228, 4
          %v1230 = vmax.f32 %v1228, %v1229
          %v1231 = vrot.slane %v1230, 2
          %v1232 = vmax.f32 %v1230, %v1231
          %v1233 = vrot.slane %v1232, 1
          %v1234 = vmax.f32 %v1232, %v1233
          %v1243 = vcombine.low %v1185, %v1192
          %v1244 = vcombine.low %v1199, %v1206
          %v1245 = vcombine.low %v1213, %v1220
          %v1246 = vcombine.low %v1227, %v1234
          %v1248 = vunpack.c.l.s4 1966171168
          %v1249 = vunpack.c.0.s8 %v1248
          %v1250 = vlaneseq
          %v1251 = vshrl.u32 %v1250, 7
          %v1252 = vsub.s32 %v1249, %v1251
          %v1253 = vrot.slane %v1243, %v1252
          %v1255 = vunpack.c.l.s4 1966171168
          %v1256 = vunpack.c.0.s8 %v1255
          %v1257 = vlaneseq
          %v1258 = vshrl.u32 %v1257, 7
          %v1259 = vsub.s32 %v1256, %v1258
          %v1260 = vrot.slane %v1244, %v1259
          %v1262 = vunpack.c.l.s4 1966171168
          %v1263 = vunpack.c.0.s8 %v1262
          %v1264 = vlaneseq
          %v1265 = vshrl.u32 %v1264, 7
          %v1266 = vsub.s32 %v1263, %v1265
          %v1267 = vrot.slane %v1245, %v1266
          %v1269 = vunpack.c.l.s4 1966171168
          %v1270 = vunpack.c.0.s8 %v1269
          %v1271 = vlaneseq
          %v1272 = vshrl.u32 %v1271, 7
          %v1273 = vsub.s32 %v1270, %v1272
          %v1274 = vrot.slane %v1246, %v1273
          %v1275 = vcombine.low %v1253, %v1260
          %v1276 = vcombine.low %v1267, %v1274
          %v1278 = vunpack.c.l.s4 1966171168
          %v1279 = vunpack.c.0.s8 %v1278
          %v1280 = vlaneseq
          %v1281 = vshrl.u32 %v1280, 7
          %v1282 = vsub.s32 %v1279, %v1281
          %v1283 = vrot.slane %v1275, %v1282
          %v1285 = vunpack.c.l.s4 1966171168
          %v1286 = vunpack.c.0.s8 %v1285
          %v1287 = vlaneseq
          %v1288 = vshrl.u32 %v1287, 7
          %v1289 = vsub.s32 %v1286, %v1288
          %v1290 = vrot.slane %v1276, %v1289
          %v1291 = vcombine.low %v1283, %v1290
          %1293 = vst [vmem:[%s356] sm:$0xff] %v1291
        $region76: #{tpu_custom_call.1} parent=47 // pred_fallthru
          _
        %s1294 = sand.u32 %s200, 1
        %s1295 = scalar_lea.sflag [#allocation5], %s1294
        %s1296 = sand.u32 %s200, 1
        %s1297 = smul.addr %s1296, 8
        %s1298 = scalar_lea.vmem [#allocation11], %s1297
        // Predicated region
        $region77: #{tpu_custom_call.1} parent=47 // pred_check
          %p1299 = pneg %p210
        $region78: #{tpu_custom_call.1} parent=47 // pred_check_branch
          %1301 = sbr.rel (%p1299) target = $region80
        $region79: #{tpu_custom_call.1} parent=47 // pred_region
          %s1303 = ssub.s32 128, 128
          %1304 = vsyncadd %s1295, %s1303
          %s1305 = smul.addr %s30, 8
          %s1306 = smul.addr %s1305, 16
          %s1307 = scalar_lea.hbm %s7, %s1306
          %s1309 = sshll.u32 %s1298, 4
          %s1310 = int_to_ptr.vmem [resolvable:$true] %s1309
          %1312 = dma.vmem_to_hbm [thread:$0]  %s1310, 128, %s1307, %s1295
        $region80: #{tpu_custom_call.1} parent=47 // pred_fallthru
          _
      $region48: #{tpu_custom_call.1} parent=5 // pred_fallthru
        _
      %p1313 = scmp.le.s32.totalorder 2, %s21
      // Predicated region
      $region81: #{tpu_custom_call.1} parent=5 // pred_check
        %p1314 = pneg %p1313
      $region82: #{tpu_custom_call.1} parent=5 // pred_check_branch
        %1316 = sbr.rel (%p1314) target = $region84
      $region83: #{tpu_custom_call.1} parent=5 // pred_region
        %s1317 = ssub.s32 %s21, 2
        // Predicated region
        $region85: #{tpu_custom_call.1} parent=83 // pred_check
          %p1318 = pneg %p216
        $region86: #{tpu_custom_call.1} parent=83 // pred_check_branch
          %1320 = sbr.rel (%p1318) target = $region88
        $region87: #{tpu_custom_call.1} parent=83 // pred_region
          %s1321 = sand.u32 %s201, 1
          %s1322 = scalar_lea.sflag [#allocation5], %s1321
          %s1323 = sand.u32 %s201, 1
          %s1324 = smul.addr %s1323, 8
          %s1325 = scalar_lea.vmem [#allocation11], %s1324
          %1326 = dma.done %s1322, 128
        $region88: #{tpu_custom_call.1} parent=83 // pred_fallthru
          _
      $region84: #{tpu_custom_call.1} parent=5 // pred_fallthru
        _
    $region6: #{tpu_custom_call.1} parent=1 // loop_footer
      %s25 = sadd.s32 1, %s21
    $region7: #{tpu_custom_call.1} parent=1 // loop_footer_branch
      %20 = sbr.rel target = $region3
    $region8: #{tpu_custom_call.1} parent=1 // loop_exit
      _
    %1327 = vsyncpa [#allocation4], 1
    %s1328 = scalar_lea.sflag [#allocation4], 1
    %1329 = vsyncpa %s1328, 1
    %1330 = vsyncpa [#allocation7], 1
    %1331 = vsyncpa [#allocation10], 1
    %1332 = vsyncpa [#allocation5], 1
    %s1333 = scalar_lea.sflag [#allocation5], 1
    %1334 = vsyncpa %s1333, 1

</llo_original>
